<compile_context>
chip_gen: v5e
topology: v5e:2x2
jax: 0.10.0
libtpu: 0.0.40
codegen_flags: <defaults>
</compile_context>

<pallas_src>
import jax
import jax.numpy as jnp
import numpy as np
from jax.experimental import pallas as pl
from jax.experimental.pallas import tpu as pltpu

# ---------------------------------------------------------------------------
# Model hyper-parameters (small, consistent with an "audio spectrogram" input)
# ---------------------------------------------------------------------------
B, CIN, H, W = 2, 4, 16, 16          # input:  (B, CIN, H, W) in NCHW
COUT = 32                            # backbone conv channels
NUM_CLASSES = 8                      # classifier output dim
KH = KW = 3                          # conv kernel
PAD = 1                              # "same" padding
PATCH = KH * KW * CIN                # im2col contraction depth = 36


# ---------------------------------------------------------------------------
# Single fused kernel: per batch element
#   patches: (1, H*W, PATCH)      -> conv as one im2col matmul
#   cw:      (PATCH, COUT)        -> flattened conv weights
#   cb:      (1, COUT)            -> conv bias
#   fw:      (COUT, NUM_CLASSES)  -> classifier weights
#   fb:      (1, NUM_CLASSES)     -> classifier bias
#   out:     (1, 1, NUM_CLASSES)  -> logits for this batch element
# ---------------------------------------------------------------------------
def fused_model_kernel(p_ref, cw_ref, cb_ref, fw_ref, fb_ref, o_ref):
    # Conv: one K=36 matmul on the MXU, f32 accumulate.
    acts = jnp.dot(p_ref[0], cw_ref[...],
                   preferred_element_type=jnp.float32)          # (H*W, COUT)
    acts = jnp.maximum(acts + cb_ref[...], 0.0)                 # bias + ReLU
    # Global average pool over spatial rows (stays in (rows, channels) layout).
    pooled = jnp.sum(acts, axis=0, keepdims=True) * (1.0 / (H * W))  # (1, COUT)
    # Linear classifier.
    logits = jnp.dot(pooled, fw_ref[...],
                     preferred_element_type=jnp.float32) + fb_ref[...]
    o_ref[0, :, :] = logits.astype(o_ref.dtype)


# ---------------------------------------------------------------------------
# Wrapper-side im2col (layout plumbing only; tap order (kh, kw, cin) matches
# conv_w.reshape(KH*KW*CIN, COUT)).
# ---------------------------------------------------------------------------
def _im2col(x_nhwc):
    x_pad = jnp.pad(x_nhwc, ((0, 0), (PAD, PAD), (PAD, PAD), (0, 0)))
    taps = [x_pad[:, kh:kh + H, kw:kw + W, :]
            for kh in range(KH) for kw in range(KW)]
    patches = jnp.concatenate(taps, axis=-1)                    # (B, H, W, PATCH)
    return patches.reshape(B, H * W, PATCH)


def fused_forward(patches, conv_w_flat, conv_b, fc_w, fc_b):
    out = pl.pallas_call(
        fused_model_kernel,
        out_shape=jax.ShapeDtypeStruct((B, 1, NUM_CLASSES), jnp.float32),
        grid_spec=pltpu.PrefetchScalarGridSpec(
            num_scalar_prefetch=0,
            grid=(B,),
            in_specs=[
                pl.BlockSpec((1, H * W, PATCH), lambda b: (b, 0, 0)),
                pl.BlockSpec((PATCH, COUT), lambda b: (0, 0)),
                pl.BlockSpec((1, COUT), lambda b: (0, 0)),
                pl.BlockSpec((COUT, NUM_CLASSES), lambda b: (0, 0)),
                pl.BlockSpec((1, NUM_CLASSES), lambda b: (0, 0)),
            ],
            out_specs=pl.BlockSpec((1, 1, NUM_CLASSES), lambda b: (b, 0, 0)),
        ),
        compiler_params=pltpu.CompilerParams(
            dimension_semantics=("parallel",)),   # shards batch over v7x's 2 TCs
    )(patches, conv_w_flat, conv_b, fc_w, fc_b)
    return out.reshape(B, NUM_CLASSES)


# ---------------------------------------------------------------------------
# Full forward: backbone (conv+ReLU+GAP) -> classifier, all in one pallas_call
# ---------------------------------------------------------------------------
def init_params():
    k = jax.random.PRNGKey(0)
    k1, k2, k3, k4 = jax.random.split(k, 4)
    conv_w = jax.random.normal(k1, (KH, KW, CIN, COUT), jnp.float32) \
        * (2.0 / (KH * KW * CIN)) ** 0.5
    conv_b = jax.random.normal(k2, (1, COUT), jnp.float32) * 0.01
    fc_w = jax.random.normal(k3, (COUT, NUM_CLASSES), jnp.float32) \
        * (1.0 / COUT) ** 0.5
    fc_b = jax.random.normal(k4, (1, NUM_CLASSES), jnp.float32) * 0.01
    return conv_w, conv_b, fc_w, fc_b


@jax.jit
def model_forward(x_nchw, conv_w, conv_b, fc_w, fc_b):
    # NCHW (PyTorch convention) -> NHWC (channels on the lane axis)
    x_nhwc = jnp.transpose(x_nchw, (0, 2, 3, 1))
    patches = _im2col(x_nhwc)                       # (B, H*W, PATCH)
    cw = conv_w.reshape(PATCH, COUT)                # (36, COUT)
    return fused_forward(patches, cw, conv_b, fc_w, fc_b)


def reference_forward(x_nchw, conv_w, conv_b, fc_w, fc_b):
    # Pure-JAX reference (same math, no Pallas) for a correctness check.
    x_nhwc = jnp.transpose(x_nchw, (0, 2, 3, 1))
    patches = _im2col(x_nhwc)
    acts = jnp.einsum('bpk,kc->bpc', patches, conv_w.reshape(PATCH, COUT)) + conv_b
    acts = jnp.maximum(acts, 0.0)
    pooled = jnp.mean(acts, axis=1)                 # (B, COUT)
    return pooled @ fc_w + fc_b                     # (B, NUM_CLASSES)


if __name__ == "__main__":
    key = jax.random.PRNGKey(0)
    x = jax.random.normal(key, (B, CIN, H, W), jnp.float32)   # NCHW input
    params = init_params()
    out = model_forward(x, *params)
    jax.block_until_ready(out)
    assert out.shape == (B, NUM_CLASSES)
    ref = reference_forward(x, *params)
    np.testing.assert_allclose(np.asarray(out), np.asarray(ref),
                               rtol=2e-4, atol=2e-4)
    print("KERNEL_OK")
</pallas_src>

<mosaic_0001>
module attributes {stable_mosaic.version = 11 : i64} {
  func.func @fused_model_kernel(%arg0: i32, %arg1: memref<1x256x36xf32, #tpu.memory_space<vmem>>, %arg2: memref<36x32xf32, #tpu.memory_space<vmem>>, %arg3: memref<1x32xf32, #tpu.memory_space<vmem>>, %arg4: memref<32x8xf32, #tpu.memory_space<vmem>>, %arg5: memref<1x8xf32, #tpu.memory_space<vmem>>, %arg6: memref<1x1x8xf32, #tpu.memory_space<vmem>>) attributes {dimension_semantics = [#tpu.dimension_semantics<parallel>], iteration_bounds = array<i64: 2>, scalar_prefetch = 0 : i64, scratch_operands = 0 : i64, tpu.core_type = #tpu.core_type<tc>, window_params = [{transform_indices = @transform_0, window_bounds = array<i64: 1, 256, 36>}, {pipeline_mode = #tpu.pipeline_mode<synchronous>, transform_indices = @transform_1, window_bounds = array<i64: 36, 32>}, {pipeline_mode = #tpu.pipeline_mode<synchronous>, transform_indices = @transform_2, window_bounds = array<i64: 1, 32>}, {pipeline_mode = #tpu.pipeline_mode<synchronous>, transform_indices = @transform_3, window_bounds = array<i64: 32, 8>}, {pipeline_mode = #tpu.pipeline_mode<synchronous>, transform_indices = @transform_4, window_bounds = array<i64: 1, 8>}, {transform_indices = @transform_5, window_bounds = array<i64: 1, 1, 8>}]} {
    %c0 = arith.constant 0 : index
    %c0_0 = arith.constant 0 : index
    %c0_1 = arith.constant 0 : index
    %0 = vector.load %arg1[%c0, %c0_0, %c0_1] : memref<1x256x36xf32, #tpu.memory_space<vmem>>, vector<1x256x36xf32>
    %1 = vector.shape_cast %0 : vector<1x256x36xf32> to vector<256x36xf32>
    %c0_2 = arith.constant 0 : index
    %c0_3 = arith.constant 0 : index
    %2 = vector.load %arg2[%c0_2, %c0_3] : memref<36x32xf32, #tpu.memory_space<vmem>>, vector<36x32xf32>
    %cst = arith.constant dense<0.000000e+00> : vector<256x32xf32>
    %3 = tpu.matmul %1, %2, %cst {dimension_numbers = #tpu.dot_dimension_numbers<[1], [0], [0], [1], [0, 0, 1, 1], [], []>} : vector<256x36xf32>, vector<36x32xf32>, vector<256x32xf32> -> vector<256x32xf32>
    %c0_4 = arith.constant 0 : index
    %c0_5 = arith.constant 0 : index
    %4 = vector.load %arg3[%c0_4, %c0_5] : memref<1x32xf32, #tpu.memory_space<vmem>>, vector<1x32xf32>
    %5 = vector.broadcast %4 : vector<1x32xf32> to vector<256x32xf32>
    %6 = arith.addf %3, %5 : vector<256x32xf32>
    %cst_6 = arith.constant 0.000000e+00 : f32
    %7 = vector.broadcast %cst_6 : f32 to vector<256x32xf32>
    %8 = arith.maximumf %6, %7 : vector<256x32xf32>
    %cst_7 = arith.constant dense<0.000000e+00> : vector<32xf32>
    %9 = vector.multi_reduction <add>, %8, %cst_7 [0] : vector<256x32xf32> to vector<32xf32>
    %10 = vector.shape_cast %9 : vector<32xf32> to vector<1x32xf32>
    %cst_8 = arith.constant 3.906250e-03 : f32
    %11 = vector.broadcast %cst_8 : f32 to vector<1x32xf32>
    %12 = arith.mulf %10, %11 : vector<1x32xf32>
    %c0_9 = arith.constant 0 : index
    %c0_10 = arith.constant 0 : index
    %13 = vector.load %arg4[%c0_9, %c0_10] : memref<32x8xf32, #tpu.memory_space<vmem>>, vector<32x8xf32>
    %cst_11 = arith.constant dense<0.000000e+00> : vector<1x8xf32>
    %14 = tpu.matmul %12, %13, %cst_11 {dimension_numbers = #tpu.dot_dimension_numbers<[1], [0], [0], [1], [0, 0, 1, 1], [], []>} : vector<1x32xf32>, vector<32x8xf32>, vector<1x8xf32> -> vector<1x8xf32>
    %c0_12 = arith.constant 0 : index
    %c0_13 = arith.constant 0 : index
    %15 = vector.load %arg5[%c0_12, %c0_13] : memref<1x8xf32, #tpu.memory_space<vmem>>, vector<1x8xf32>
    %16 = arith.addf %14, %15 : vector<1x8xf32>
    %c0_14 = arith.constant 0 : index
    %c0_15 = arith.constant 0 : index
    %c0_16 = arith.constant 0 : index
    %17 = vector.load %arg6[%c0_14, %c0_15, %c0_16] : memref<1x1x8xf32, #tpu.memory_space<vmem>>, vector<1x1x8xf32>
    %18 = vector.shape_cast %17 : vector<1x1x8xf32> to vector<1x8xf32>
    %19 = vector.shape_cast %16 : vector<1x8xf32> to vector<1x1x8xf32>
    tpu.vector_store %arg6[%c0_14, %c0_15, %c0_16], %19 {strides = array<i32>} : memref<1x1x8xf32, #tpu.memory_space<vmem>>, vector<1x1x8xf32>,
    return
  }
  func.func @transform_0(%arg0: i32) -> (i32, i32, i32) {
    %c0_i32 = arith.constant 0 : i32
    %c0_i32_0 = arith.constant 0 : i32
    %c0_i32_1 = arith.constant 0 : i32
    return %arg0, %c0_i32, %c0_i32_0 : i32, i32, i32
  }
  func.func @transform_1(%arg0: i32) -> (i32, i32) {
    %c0_i32 = arith.constant 0 : i32
    %c0_i32_0 = arith.constant 0 : i32
    %c0_i32_1 = arith.constant 0 : i32
    return %c0_i32, %c0_i32_0 : i32, i32
  }
  func.func @transform_2(%arg0: i32) -> (i32, i32) {
    %c0_i32 = arith.constant 0 : i32
    %c0_i32_0 = arith.constant 0 : i32
    %c0_i32_1 = arith.constant 0 : i32
    return %c0_i32, %c0_i32_0 : i32, i32
  }
  func.func @transform_3(%arg0: i32) -> (i32, i32) {
    %c0_i32 = arith.constant 0 : i32
    %c0_i32_0 = arith.constant 0 : i32
    %c0_i32_1 = arith.constant 0 : i32
    return %c0_i32, %c0_i32_0 : i32, i32
  }
  func.func @transform_4(%arg0: i32) -> (i32, i32) {
    %c0_i32 = arith.constant 0 : i32
    %c0_i32_0 = arith.constant 0 : i32
    %c0_i32_1 = arith.constant 0 : i32
    return %c0_i32, %c0_i32_0 : i32, i32
  }
  func.func @transform_5(%arg0: i32) -> (i32, i32, i32) {
    %c0_i32 = arith.constant 0 : i32
    %c0_i32_0 = arith.constant 0 : i32
    %c0_i32_1 = arith.constant 0 : i32
    return %arg0, %c0_i32, %c0_i32_0 : i32, i32, i32
  }
}

</mosaic_0001>

<llo_original>
// kernel: model_forward.1
$region0: #{model_forward.1}
  #allocation0 [shape = 'u32[]', space=smem, size = 0x4, offset = 0x4, fixed_abs, tag = 'smem constant byte address 0x4 - core index']
  #allocation1 [shape = 'u32[72,128]{1,0:T(1,128)}', space=vmem, size = 0x9000, scoped, tag = 'internal scratch']
  %s0 = inlined_call_operand.vmem [shape: f32[2,256,36], index: 0, kind: input, shape index: {}]
  %s1 = inlined_call_operand.vmem [shape: f32[36,32], index: 1, kind: input, shape index: {}]
  %s2 = inlined_call_operand.vmem [shape: f32[1,32], index: 2, kind: input, shape index: {}]
  %s3 = inlined_call_operand.vmem [shape: f32[32,8], index: 3, kind: input, shape index: {}]
  %s4 = inlined_call_operand.vmem [shape: f32[1,8], index: 4, kind: input, shape index: {}]
  %s5 = inlined_call_operand.hbm [shape: f32[2,1,8], index: 5, kind: output, shape index: {}]
  %s6 = sld [smem:[#allocation0]]
  $region53: #{model_forward.1} parent=0
    _
  %s8 = ssub.s32 1, %s6
  %s9 = scalar_select 0, %s8, %s6
  $region1: #{model_forward.1} parent=0
    #allocation2 [shape = 'u8[1024]{0}', space=vmem, size = 0x400, scoped, tag = 'output window, operand 0']
    #allocation3 [shape = 's32[2]{0}', space=sflag, size = 0x8, scoped, tag = 'scoped memory for model_forward.1']
    %10 = vsyncpa [#allocation3], 0
    %s11 = scalar_lea.sflag [#allocation3], 1
    %12 = vsyncpa %s11, 0
    loop: start=0, step=1, limit=4
    $region2: #{model_forward.1} parent=1 // loop_pre_header
      _
    $region3: #{model_forward.1} parent=1 // loop_header
      %s14 = sphi 0, %s18
      %p15 = scmp.ge.s32.totalorder %s14, 4
      %s24 = sphi 0, %s26
      %s27 = sphi 0, %s24
      %s28 = sphi 0, %s27
      %s44 = sphi 0, %s28
      %s48 = sphi 0, %s48
      %s50 = sphi 0, %s48
      %s51 = sphi 0, %s50
      %s65 = sphi 0, %s51
      %s69 = sphi 0, %s69
      %s71 = sphi 0, %s69
      %s72 = sphi 0, %s71
      %s86 = sphi 0, %s72
      %s90 = sphi 0, %s90
      %s92 = sphi 0, %s90
      %s93 = sphi 0, %s92
      %s107 = sphi 0, %s93
      %s111 = sphi 0, %s111
      %s113 = sphi 0, %s111
      %s114 = sphi 0, %s113
      %s128 = sphi 0, %s114
      %s134 = sphi 0, %s136
      %s137 = sphi 0, %s134
      %s138 = sphi 0, %s137
      %s154 = sphi 0, %s138
    $region4: #{model_forward.1} parent=1 // loop_header_branch
      %17 = sbr.rel (%p15) target = $region8
    $region5: #{model_forward.1} parent=1 // loop_body
      %s19 = ssub.s32 %s14, 1
      %s20 = ssub.s32 %s14, 2
      %s21 = sadd.s32 %s14, 1
      %s22 = ssub.s32 %s14, %s21
      %p23 = scmp.eq.s32.totalorder %s22, 0
      %s25 = sadd.s32 %s24, 1
      %s26 = scalar_select %p23, %s24, %s25
      %p29 = pneg %p23
      %p30 = scmp.eq.s32.totalorder %s14, 1
      %p31 = por %p29, %p30
      %p32 = scmp.ne.s32.totalorder %s24, %s27
      %p33 = scmp.eq.s32.totalorder %s14, 0
      %p34 = por %p32, %p33
      %p35 = scmp.ne.s32.totalorder %s24, %s27
      %p36 = scmp.eq.s32.totalorder %s19, 1
      %p37 = por %p35, %p36
      %p38 = scmp.ne.s32.totalorder %s27, %s28
      %p39 = scmp.eq.s32.totalorder %s19, 0
      %p40 = por %p38, %p39
      %p41 = scmp.ne.s32.totalorder %s27, %s28
      %p42 = scmp.eq.s32.totalorder %s20, 1
      %p43 = por %p41, %p42
      %p45 = scmp.ne.s32.totalorder %s28, %s44
      %p46 = scmp.eq.s32.totalorder %s20, 0
      %p47 = por %p45, %p46
      %s49 = sadd.s32 %s48, 1
      %p52 = scmp.eq.s32.totalorder %s14, 1
      %p53 = scmp.ne.s32.totalorder %s48, %s50
      %p54 = scmp.eq.s32.totalorder %s14, 0
      %p55 = por %p53, %p54
      %p56 = scmp.ne.s32.totalorder %s48, %s50
      %p57 = scmp.eq.s32.totalorder %s19, 1
      %p58 = por %p56, %p57
      %p59 = scmp.ne.s32.totalorder %s50, %s51
      %p60 = scmp.eq.s32.totalorder %s19, 0
      %p61 = por %p59, %p60
      %p62 = scmp.ne.s32.totalorder %s50, %s51
      %p63 = scmp.eq.s32.totalorder %s20, 1
      %p64 = por %p62, %p63
      %p66 = scmp.ne.s32.totalorder %s51, %s65
      %p67 = scmp.eq.s32.totalorder %s20, 0
      %p68 = por %p66, %p67
      %s70 = sadd.s32 %s69, 1
      %p73 = scmp.eq.s32.totalorder %s14, 1
      %p74 = scmp.ne.s32.totalorder %s69, %s71
      %p75 = scmp.eq.s32.totalorder %s14, 0
      %p76 = por %p74, %p75
      %p77 = scmp.ne.s32.totalorder %s69, %s71
      %p78 = scmp.eq.s32.totalorder %s19, 1
      %p79 = por %p77, %p78
      %p80 = scmp.ne.s32.totalorder %s71, %s72
      %p81 = scmp.eq.s32.totalorder %s19, 0
      %p82 = por %p80, %p81
      %p83 = scmp.ne.s32.totalorder %s71, %s72
      %p84 = scmp.eq.s32.totalorder %s20, 1
      %p85 = por %p83, %p84
      %p87 = scmp.ne.s32.totalorder %s72, %s86
      %p88 = scmp.eq.s32.totalorder %s20, 0
      %p89 = por %p87, %p88
      %s91 = sadd.s32 %s90, 1
      %p94 = scmp.eq.s32.totalorder %s14, 1
      %p95 = scmp.ne.s32.totalorder %s90, %s92
      %p96 = scmp.eq.s32.totalorder %s14, 0
      %p97 = por %p95, %p96
      %p98 = scmp.ne.s32.totalorder %s90, %s92
      %p99 = scmp.eq.s32.totalorder %s19, 1
      %p100 = por %p98, %p99
      %p101 = scmp.ne.s32.totalorder %s92, %s93
      %p102 = scmp.eq.s32.totalorder %s19, 0
      %p103 = por %p101, %p102
      %p104 = scmp.ne.s32.totalorder %s92, %s93
      %p105 = scmp.eq.s32.totalorder %s20, 1
      %p106 = por %p104, %p105
      %p108 = scmp.ne.s32.totalorder %s93, %s107
      %p109 = scmp.eq.s32.totalorder %s20, 0
      %p110 = por %p108, %p109
      %s112 = sadd.s32 %s111, 1
      %p115 = scmp.eq.s32.totalorder %s14, 1
      %p116 = scmp.ne.s32.totalorder %s111, %s113
      %p117 = scmp.eq.s32.totalorder %s14, 0
      %p118 = por %p116, %p117
      %p119 = scmp.ne.s32.totalorder %s111, %s113
      %p120 = scmp.eq.s32.totalorder %s19, 1
      %p121 = por %p119, %p120
      %p122 = scmp.ne.s32.totalorder %s113, %s114
      %p123 = scmp.eq.s32.totalorder %s19, 0
      %p124 = por %p122, %p123
      %p125 = scmp.ne.s32.totalorder %s113, %s114
      %p126 = scmp.eq.s32.totalorder %s20, 1
      %p127 = por %p125, %p126
      %p129 = scmp.ne.s32.totalorder %s114, %s128
      %p130 = scmp.eq.s32.totalorder %s20, 0
      %p131 = por %p129, %p130
      %s132 = ssub.s32 %s14, %s21
      %p133 = scmp.eq.s32.totalorder %s132, 0
      %s135 = sadd.s32 %s134, 1
      %s136 = scalar_select %p133, %s134, %s135
      %p139 = pneg %p133
      %p140 = scmp.eq.s32.totalorder %s14, 1
      %p141 = por %p139, %p140
      %p142 = scmp.ne.s32.totalorder %s134, %s137
      %p143 = scmp.eq.s32.totalorder %s14, 0
      %p144 = por %p142, %p143
      %p145 = scmp.ne.s32.totalorder %s134, %s137
      %p146 = scmp.eq.s32.totalorder %s19, 1
      %p147 = por %p145, %p146
      %p148 = scmp.ne.s32.totalorder %s137, %s138
      %p149 = scmp.eq.s32.totalorder %s19, 0
      %p150 = por %p148, %p149
      %p151 = scmp.ne.s32.totalorder %s137, %s138
      %p152 = scmp.eq.s32.totalorder %s20, 1
      %p153 = por %p151, %p152
      %p155 = scmp.ne.s32.totalorder %s138, %s154
      %p156 = scmp.eq.s32.totalorder %s20, 0
      %p157 = por %p155, %p156
      %p158 = scmp.le.s32.totalorder 1, %s14
      %p159 = scmp.lt.s32.totalorder %s14, 3
      %p160 = pnand %p158, %p159
      %p161 = pneg %p160
      // Predicated region
      $region9: #{model_forward.1} parent=5 // pred_check
        _
      $region10: #{model_forward.1} parent=5 // pred_check_branch
        %163 = sbr.rel (%p160) target = $region12
      $region11: #{model_forward.1} parent=5 // pred_region
        %s164 = ssub.s32 %s14, 1
        // Predicated region
        $region13: #{model_forward.1} parent=11 // pred_check
          %p165 = pneg %p61
        $region14: #{model_forward.1} parent=11 // pred_check_branch
          %167 = sbr.rel (%p165) target = $region16
        $region15: #{model_forward.1} parent=11 // pred_region
          _
        $region16: #{model_forward.1} parent=11 // pred_fallthru
          _
        // Predicated region
        $region17: #{model_forward.1} parent=11 // pred_check
          %p168 = pneg %p82
        $region18: #{model_forward.1} parent=11 // pred_check_branch
          %170 = sbr.rel (%p168) target = $region20
        $region19: #{model_forward.1} parent=11 // pred_region
          _
        $region20: #{model_forward.1} parent=11 // pred_fallthru
          _
        // Predicated region
        $region21: #{model_forward.1} parent=11 // pred_check
          %p171 = pneg %p103
        $region22: #{model_forward.1} parent=11 // pred_check_branch
          %173 = sbr.rel (%p171) target = $region24
        $region23: #{model_forward.1} parent=11 // pred_region
          _
        $region24: #{model_forward.1} parent=11 // pred_fallthru
          _
        // Predicated region
        $region25: #{model_forward.1} parent=11 // pred_check
          %p174 = pneg %p124
        $region26: #{model_forward.1} parent=11 // pred_check_branch
          %176 = sbr.rel (%p174) target = $region28
        $region27: #{model_forward.1} parent=11 // pred_region
          _
        $region28: #{model_forward.1} parent=11 // pred_fallthru
          _
      $region12: #{model_forward.1} parent=5 // pred_fallthru
        _
      %p177 = scmp.lt.s32.totalorder %s14, 2
      // Predicated region
      $region29: #{model_forward.1} parent=5 // pred_check
        %p178 = pneg %p177
      $region30: #{model_forward.1} parent=5 // pred_check_branch
        %180 = sbr.rel (%p178) target = $region32
      $region31: #{model_forward.1} parent=5 // pred_region
        // Predicated region
        $region33: #{model_forward.1} parent=31 // pred_check
          %p181 = pneg %p34
        $region34: #{model_forward.1} parent=31 // pred_check_branch
          %183 = sbr.rel (%p181) target = $region36
        $region35: #{model_forward.1} parent=31 // pred_region
          %p184 = scmp.lt.s32.totalorder %s14, 1
          %s185 = scalar_select %p184, %s14, 1
          %s186 = smul.addr %s185, 32
          %s187 = smul.addr %s186, 8
          %s188 = scalar_lea.vmem %s0, %s187
        $region36: #{model_forward.1} parent=31 // pred_fallthru
          _
      $region32: #{model_forward.1} parent=5 // pred_fallthru
        _
      %p189 = scmp.le.s32.totalorder 1, %s14
      %p190 = scmp.lt.s32.totalorder %s14, 3
      %p191 = pnand %p189, %p190
      %p192 = pneg %p191
      // Predicated region
      $region37: #{model_forward.1} parent=5 // pred_check
        _
      $region38: #{model_forward.1} parent=5 // pred_check_branch
        %194 = sbr.rel (%p191) target = $region40
      $region39: #{model_forward.1} parent=5 // pred_region
        %s195 = ssub.s32 %s14, 1
        %p196 = scmp.lt.s32.totalorder %s19, 1
        %s197 = scalar_select %p196, %s19, 1
        %s198 = smul.addr %s197, 32
        %s199 = smul.addr %s198, 8
        %s200 = scalar_lea.vmem %s0, %s199
        %p201 = pneg %p40
        %p202 = pneg %p37
        %p203 = pneg %p61
        %p204 = pneg %p58
        %p205 = pneg %p82
        %p206 = pneg %p79
        %p207 = pneg %p103
        %p208 = pneg %p100
        %p209 = pneg %p124
        %p210 = pneg %p121
        %p211 = pneg %p150
        %p212 = pneg %p147
        %s213 = sand.u32 %s137, 1
        %s214 = scalar_lea.sflag [#allocation3], %s213
        %s215 = sand.u32 %s137, 1
        %s216 = scalar_lea.vmem [#allocation2], %s215
        %p217 = scmp.lt.s32.totalorder %s19, 1
        %s218 = scalar_select %p217, %s19, 1
        %s219 = smul.addr %s218, 32
        %s220 = smul.addr %s219, 8
        %s221 = scalar_lea.vmem %s0, %s220
        %v222 = vld [vmem:[%s221] sm:$0xff]
        %v223 = vld [vmem:[%s221 + $0x8] sm:$0xff]
        %v224 = vld [vmem:[%s221 + $0x10] sm:$0xff]
        %v225 = vld [vmem:[%s221 + $0x18] sm:$0xff]
        %v226 = vld [vmem:[%s221 + $0x20] sm:$0xff]
        %v227 = vld [vmem:[%s221 + $0x28] sm:$0xff]
        %v228 = vld [vmem:[%s221 + $0x30] sm:$0xff]
        %v229 = vld [vmem:[%s221 + $0x38] sm:$0xff]
        %v230 = vld [vmem:[%s221 + $0x40] sm:$0xff]
        %v231 = vld [vmem:[%s221 + $0x48] sm:$0xff]
        %v232 = vld [vmem:[%s221 + $0x50] sm:$0xff]
        %v233 = vld [vmem:[%s221 + $0x58] sm:$0xff]
        %v234 = vld [vmem:[%s221 + $0x60] sm:$0xff]
        %v235 = vld [vmem:[%s221 + $0x68] sm:$0xff]
        %v236 = vld [vmem:[%s221 + $0x70] sm:$0xff]
        %v237 = vld [vmem:[%s221 + $0x78] sm:$0xff]
        %v238 = vld [vmem:[%s221 + $0x80] sm:$0xff]
        %v239 = vld [vmem:[%s221 + $0x88] sm:$0xff]
        %v240 = vld [vmem:[%s221 + $0x90] sm:$0xff]
        %v241 = vld [vmem:[%s221 + $0x98] sm:$0xff]
        %v242 = vld [vmem:[%s221 + $0xa0] sm:$0xff]
        %v243 = vld [vmem:[%s221 + $0xa8] sm:$0xff]
        %v244 = vld [vmem:[%s221 + $0xb0] sm:$0xff]
        %v245 = vld [vmem:[%s221 + $0xb8] sm:$0xff]
        %v246 = vld [vmem:[%s221 + $0xc0] sm:$0xff]
        %v247 = vld [vmem:[%s221 + $0xc8] sm:$0xff]
        %v248 = vld [vmem:[%s221 + $0xd0] sm:$0xff]
        %v249 = vld [vmem:[%s221 + $0xd8] sm:$0xff]
        %v250 = vld [vmem:[%s221 + $0xe0] sm:$0xff]
        %v251 = vld [vmem:[%s221 + $0xe8] sm:$0xff]
        %v252 = vld [vmem:[%s221 + $0xf0] sm:$0xff]
        %v253 = vld [vmem:[%s221 + $0xf8] sm:$0xff]
        %v254 = vld [vmem:[%s1] sm:$0xff]
        %v255 = vld [vmem:[%s1 + $0x8] sm:$0xff]
        %v256 = vld [vmem:[%s1 + $0x10] sm:$0xff]
        %v257 = vld [vmem:[%s1 + $0x18] sm:$0xff]
        %v258 = vld [vmem:[%s1 + $0x20] sm:$0xf]
        %v259 = vld [vmem:[%s2] sm:$0x1]
        %v261 = vperm.slane %v259, 0
        %vm263 = vcmask 293888
        %v265 = vsel %vm263, %v222, 0
        %v268 = vsel %vm263, %v223, 0
        %v271 = vsel %vm263, %v224, 0
        %v274 = vsel %vm263, %v225, 0
        %v277 = vsel %vm263, %v226, 0
        %v280 = vsel %vm263, %v227, 0
        %v283 = vsel %vm263, %v228, 0
        %v286 = vsel %vm263, %v229, 0
        %v289 = vsel %vm263, %v230, 0
        %v292 = vsel %vm263, %v231, 0
        %v295 = vsel %vm263, %v232, 0
        %v298 = vsel %vm263, %v233, 0
        %v301 = vsel %vm263, %v234, 0
        %v304 = vsel %vm263, %v235, 0
        %v307 = vsel %vm263, %v236, 0
        %v310 = vsel %vm263, %v237, 0
        %v313 = vsel %vm263, %v238, 0
        %v316 = vsel %vm263, %v239, 0
        %v319 = vsel %vm263, %v240, 0
        %v322 = vsel %vm263, %v241, 0
        %v325 = vsel %vm263, %v242, 0
        %v328 = vsel %vm263, %v243, 0
        %v331 = vsel %vm263, %v244, 0
        %v334 = vsel %vm263, %v245, 0
        %v337 = vsel %vm263, %v246, 0
        %v340 = vsel %vm263, %v247, 0
        %v343 = vsel %vm263, %v248, 0
        %v346 = vsel %vm263, %v249, 0
        %v349 = vsel %vm263, %v250, 0
        %v352 = vsel %vm263, %v251, 0
        %v355 = vsel %vm263, %v252, 0
        %v358 = vsel %vm263, %v253, 0
        %vm360 = vcmask 1043456
        %v362 = vsel %vm360, %v258, 0
        %364 = vmatpush.msra.mxu0 0.0
        %365 = vmatpush.msra.mxu0 0.0
        %366 = vmatpush.msra.mxu0 0.0
        %367 = vmatpush.msra.mxu0 0.0
        %368 = vmatpush.msra.mxu0 0.0
        %369 = vmatpush.msra.mxu0 0.0
        %370 = vmatpush.msra.mxu0 0.0
        %371 = vmatpush.msra.mxu0 0.0
        %372 = vmatpush.msra.mxu0 0.0
        %373 = vmatpush.msra.mxu0 0.0
        %374 = vmatpush.msra.mxu0 0.0
        %375 = vmatpush.msra.mxu0 %v362
        %376 = vmatpush.msra.mxu0 %v257
        %377 = vmatpush.msra.mxu0 %v256
        %378 = vmatpush.msra.mxu0 %v255
        %379 = vmatpush.msra.mxu0 %v254
        %380 = vmatmul.f32.gmra.mxu0 %v265
        %v381 = vpop.f32.mrf.mxu0
        %v382 = vadd.f32 %v261, %v381
        %383 = vmatmul.f32.gmra.mxu0 %v268
        %v384 = vpop.f32.mrf.mxu0
        %v385 = vadd.f32 %v261, %v384
        %386 = vmatmul.f32.gmra.mxu0 %v271
        %v387 = vpop.f32.mrf.mxu0
        %v388 = vadd.f32 %v261, %v387
        %389 = vmatmul.f32.gmra.mxu0 %v274
        %v390 = vpop.f32.mrf.mxu0
        %v391 = vadd.f32 %v261, %v390
        %392 = vmatmul.f32.gmra.mxu0 %v277
        %v393 = vpop.f32.mrf.mxu0
        %v394 = vadd.f32 %v261, %v393
        %395 = vmatmul.f32.gmra.mxu0 %v280
        %v396 = vpop.f32.mrf.mxu0
        %v397 = vadd.f32 %v261, %v396
        %398 = vmatmul.f32.gmra.mxu0 %v283
        %v399 = vpop.f32.mrf.mxu0
        %v400 = vadd.f32 %v261, %v399
        %401 = vmatmul.f32.gmra.mxu0 %v286
        %v402 = vpop.f32.mrf.mxu0
        %v403 = vadd.f32 %v261, %v402
        %404 = vmatmul.f32.gmra.mxu0 %v289
        %v405 = vpop.f32.mrf.mxu0
        %v406 = vadd.f32 %v261, %v405
        %407 = vmatmul.f32.gmra.mxu0 %v292
        %v408 = vpop.f32.mrf.mxu0
        %v409 = vadd.f32 %v261, %v408
        %410 = vmatmul.f32.gmra.mxu0 %v295
        %v411 = vpop.f32.mrf.mxu0
        %v412 = vadd.f32 %v261, %v411
        %413 = vmatmul.f32.gmra.mxu0 %v298
        %v414 = vpop.f32.mrf.mxu0
        %v415 = vadd.f32 %v261, %v414
        %416 = vmatmul.f32.gmra.mxu0 %v301
        %v417 = vpop.f32.mrf.mxu0
        %v418 = vadd.f32 %v261, %v417
        %419 = vmatmul.f32.gmra.mxu0 %v304
        %v420 = vpop.f32.mrf.mxu0
        %v421 = vadd.f32 %v261, %v420
        %422 = vmatmul.f32.gmra.mxu0 %v307
        %v423 = vpop.f32.mrf.mxu0
        %v424 = vadd.f32 %v261, %v423
        %425 = vmatmul.f32.gmra.mxu0 %v310
        %v426 = vpop.f32.mrf.mxu0
        %v427 = vadd.f32 %v261, %v426
        %428 = vmatmul.f32.gmra.mxu0 %v313
        %v429 = vpop.f32.mrf.mxu0
        %v430 = vadd.f32 %v261, %v429
        %431 = vmatmul.f32.gmra.mxu0 %v316
        %v432 = vpop.f32.mrf.mxu0
        %v433 = vadd.f32 %v261, %v432
        %434 = vmatmul.f32.gmra.mxu0 %v319
        %v435 = vpop.f32.mrf.mxu0
        %v436 = vadd.f32 %v261, %v435
        %437 = vmatmul.f32.gmra.mxu0 %v322
        %v438 = vpop.f32.mrf.mxu0
        %v439 = vadd.f32 %v261, %v438
        %440 = vmatmul.f32.gmra.mxu0 %v325
        %v441 = vpop.f32.mrf.mxu0
        %v442 = vadd.f32 %v261, %v441
        %443 = vmatmul.f32.gmra.mxu0 %v328
        %v444 = vpop.f32.mrf.mxu0
        %v445 = vadd.f32 %v261, %v444
        %446 = vmatmul.f32.gmra.mxu0 %v331
        %v447 = vpop.f32.mrf.mxu0
        %v448 = vadd.f32 %v261, %v447
        %449 = vmatmul.f32.gmra.mxu0 %v334
        %v450 = vpop.f32.mrf.mxu0
        %v451 = vadd.f32 %v261, %v450
        %452 = vmatmul.f32.gmra.mxu0 %v337
        %v453 = vpop.f32.mrf.mxu0
        %v454 = vadd.f32 %v261, %v453
        %455 = vmatmul.f32.gmra.mxu0 %v340
        %v456 = vpop.f32.mrf.mxu0
        %v457 = vadd.f32 %v261, %v456
        %458 = vmatmul.f32.gmra.mxu0 %v343
        %v459 = vpop.f32.mrf.mxu0
        %v460 = vadd.f32 %v261, %v459
        %461 = vmatmul.f32.gmra.mxu0 %v346
        %v462 = vpop.f32.mrf.mxu0
        %v463 = vadd.f32 %v261, %v462
        %464 = vmatmul.f32.gmra.mxu0 %v349
        %v465 = vpop.f32.mrf.mxu0
        %v466 = vadd.f32 %v261, %v465
        %467 = vmatmul.f32.gmra.mxu0 %v352
        %v468 = vpop.f32.mrf.mxu0
        %v469 = vadd.f32 %v261, %v468
        %470 = vmatmul.f32.gmra.mxu0 %v355
        %v471 = vpop.f32.mrf.mxu0
        %v472 = vadd.f32 %v261, %v471
        %473 = vmatmul.f32.gmra.mxu0 %v358
        %v474 = vpop.f32.mrf.mxu0
        %v475 = vadd.f32 %v261, %v474
        %476 = vdwg.mxu0
        %v477 = vmax.f32 %v382, 0.0
        %v478 = vmax.f32 %v385, 0.0
        %v479 = vmax.f32 %v388, 0.0
        %v480 = vmax.f32 %v391, 0.0
        %v481 = vmax.f32 %v394, 0.0
        %v482 = vmax.f32 %v397, 0.0
        %v483 = vmax.f32 %v400, 0.0
        %v484 = vmax.f32 %v403, 0.0
        %v485 = vmax.f32 %v406, 0.0
        %v486 = vmax.f32 %v409, 0.0
        %v487 = vmax.f32 %v412, 0.0
        %v488 = vmax.f32 %v415, 0.0
        %v489 = vmax.f32 %v418, 0.0
        %v490 = vmax.f32 %v421, 0.0
        %v491 = vmax.f32 %v424, 0.0
        %v492 = vmax.f32 %v427, 0.0
        %v493 = vmax.f32 %v430, 0.0
        %v494 = vmax.f32 %v433, 0.0
        %v495 = vmax.f32 %v436, 0.0
        %v496 = vmax.f32 %v439, 0.0
        %v497 = vmax.f32 %v442, 0.0
        %v498 = vmax.f32 %v445, 0.0
        %v499 = vmax.f32 %v448, 0.0
        %v500 = vmax.f32 %v451, 0.0
        %v501 = vmax.f32 %v454, 0.0
        %v502 = vmax.f32 %v457, 0.0
        %v503 = vmax.f32 %v460, 0.0
        %v504 = vmax.f32 %v463, 0.0
        %v505 = vmax.f32 %v466, 0.0
        %v506 = vmax.f32 %v469, 0.0
        %v507 = vmax.f32 %v472, 0.0
        %v508 = vmax.f32 %v475, 0.0
        %vm509 = vcmask 261120
        %v510 = vsel %vm509, %v477, 0.0
        %v511 = vsel %vm509, %v478, 0.0
        %v512 = vadd.f32 %v510, %v511
        %v513 = vsel %vm509, %v479, 0.0
        %v514 = vadd.f32 %v512, %v513
        %v515 = vsel %vm509, %v480, 0.0
        %v516 = vadd.f32 %v514, %v515
        %v517 = vsel %vm509, %v481, 0.0
        %v518 = vadd.f32 %v516, %v517
        %v519 = vsel %vm509, %v482, 0.0
        %v520 = vadd.f32 %v518, %v519
        %v521 = vsel %vm509, %v483, 0.0
        %v522 = vadd.f32 %v520, %v521
        %v523 = vsel %vm509, %v484, 0.0
        %v524 = vadd.f32 %v522, %v523
        %v525 = vsel %vm509, %v485, 0.0
        %v526 = vadd.f32 %v524, %v525
        %v527 = vsel %vm509, %v486, 0.0
        %v528 = vadd.f32 %v526, %v527
        %v529 = vsel %vm509, %v487, 0.0
        %v530 = vadd.f32 %v528, %v529
        %v531 = vsel %vm509, %v488, 0.0
        %v532 = vadd.f32 %v530, %v531
        %v533 = vsel %vm509, %v489, 0.0
        %v534 = vadd.f32 %v532, %v533
        %v535 = vsel %vm509, %v490, 0.0
        %v536 = vadd.f32 %v534, %v535
        %v537 = vsel %vm509, %v491, 0.0
        %v538 = vadd.f32 %v536, %v537
        %v539 = vsel %vm509, %v492, 0.0
        %v540 = vadd.f32 %v538, %v539
        %v541 = vsel %vm509, %v493, 0.0
        %v542 = vadd.f32 %v540, %v541
        %v543 = vsel %vm509, %v494, 0.0
        %v544 = vadd.f32 %v542, %v543
        %v545 = vsel %vm509, %v495, 0.0
        %v546 = vadd.f32 %v544, %v545
        %v547 = vsel %vm509, %v496, 0.0
        %v548 = vadd.f32 %v546, %v547
        %v549 = vsel %vm509, %v497, 0.0
        %v550 = vadd.f32 %v548, %v549
        %v551 = vsel %vm509, %v498, 0.0
        %v552 = vadd.f32 %v550, %v551
        %v553 = vsel %vm509, %v499, 0.0
        %v554 = vadd.f32 %v552, %v553
        %v555 = vsel %vm509, %v500, 0.0
        %v556 = vadd.f32 %v554, %v555
        %v557 = vsel %vm509, %v501, 0.0
        %v558 = vadd.f32 %v556, %v557
        %v559 = vsel %vm509, %v502, 0.0
        %v560 = vadd.f32 %v558, %v559
        %v561 = vsel %vm509, %v503, 0.0
        %v562 = vadd.f32 %v560, %v561
        %v563 = vsel %vm509, %v504, 0.0
        %v564 = vadd.f32 %v562, %v563
        %v565 = vsel %vm509, %v505, 0.0
        %v566 = vadd.f32 %v564, %v565
        %v567 = vsel %vm509, %v506, 0.0
        %v568 = vadd.f32 %v566, %v567
        %v569 = vsel %vm509, %v507, 0.0
        %v570 = vadd.f32 %v568, %v569
        %v571 = vsel %vm509, %v508, 0.0
        %v572 = vadd.f32 %v570, %v571
        %v573 = vrot.slane %v572, 4
        %v574 = vadd.f32 %v572, %v573
        %v575 = vrot.slane %v574, 2
        %v576 = vadd.f32 %v574, %v575
        %v577 = vrot.slane %v576, 1
        %v578 = vadd.f32 %v576, %v577
        %v579 = vmul.f32 %v578, 0.00390625
        %v580 = vld [vmem:[%s3] sm:$0xff]
        %v581 = vld [vmem:[%s3 + $0x8] sm:$0xff]
        %v582 = vld [vmem:[%s3 + $0x10] sm:$0xff]
        %v583 = vld [vmem:[%s3 + $0x18] sm:$0xff]
        %v584 = vld [vmem:[%s4] sm:$0x1]
        %v586 = vsel %vm509, %v579, 0
        %588 = vmatpush.msra.mxu0 0.0
        %589 = vmatpush.msra.mxu0 0.0
        %590 = vmatpush.msra.mxu0 0.0
        %591 = vmatpush.msra.mxu0 0.0
        %592 = vmatpush.msra.mxu0 0.0
        %593 = vmatpush.msra.mxu0 0.0
        %594 = vmatpush.msra.mxu0 0.0
        %595 = vmatpush.msra.mxu0 0.0
        %596 = vmatpush.msra.mxu0 0.0
        %597 = vmatpush.msra.mxu0 0.0
        %598 = vmatpush.msra.mxu0 0.0
        %599 = vmatpush.msra.mxu0 0.0
        %600 = vmatpush.msra.mxu0 %v583
        %601 = vmatpush.msra.mxu0 %v582
        %602 = vmatpush.msra.mxu0 %v581
        %603 = vmatpush.msra.mxu0 %v580
        %604 = vmatmul.f32.gmra.mxu0 %v586
        %v605 = vpop.f32.mrf.mxu0
        %v606 = vadd.f32 %v584, %v605
        %607 = vdwg.mxu0
        %vm608 = vcmask 57344
        %609 = vst.msk [vmem:[%s216] sm:$0x1] %vm608, %v606
        %s610 = sand.u32 %s137, 1
        %s611 = scalar_lea.sflag [#allocation3], %s610
        %s612 = sand.u32 %s137, 1
        %s613 = scalar_lea.vmem [#allocation2], %s612
        // Predicated region
        $region41: #{model_forward.1} parent=39 // pred_check
          %p614 = pneg %p147
        $region42: #{model_forward.1} parent=39 // pred_check_branch
          %616 = sbr.rel (%p614) target = $region44
        $region43: #{model_forward.1} parent=39 // pred_region
          %618 = vsyncadd %s611, 0
          %s619 = scalar_lea.hbm %s5, %s19
          %s621 = sshll.u32 %s613, 4
          %s622 = int_to_ptr.vmem [resolvable:$true] %s621
          %s623 = sshll.u32 %s619, 4
          %s624 = int_to_ptr.hbm [resolvable:$true] %s623
          %626 = dma.vmem_to_hbm [thread:$0]  %s622, 16, %s624, %s611
        $region44: #{model_forward.1} parent=39 // pred_fallthru
          _
      $region40: #{model_forward.1} parent=5 // pred_fallthru
        _
      %p627 = scmp.le.s32.totalorder 2, %s14
      // Predicated region
      $region45: #{model_forward.1} parent=5 // pred_check
        %p628 = pneg %p627
      $region46: #{model_forward.1} parent=5 // pred_check_branch
        %630 = sbr.rel (%p628) target = $region48
      $region47: #{model_forward.1} parent=5 // pred_region
        %s631 = ssub.s32 %s14, 2
        // Predicated region
        $region49: #{model_forward.1} parent=47 // pred_check
          %p632 = pneg %p153
        $region50: #{model_forward.1} parent=47 // pred_check_branch
          %634 = sbr.rel (%p632) target = $region52
        $region51: #{model_forward.1} parent=47 // pred_region
          %s635 = sand.u32 %s138, 1
          %s636 = scalar_lea.sflag [#allocation3], %s635
          %s637 = sand.u32 %s138, 1
          %s638 = scalar_lea.vmem [#allocation2], %s637
          %640 = dma.done %s636, 16
        $region52: #{model_forward.1} parent=47 // pred_fallthru
          _
      $region48: #{model_forward.1} parent=5 // pred_fallthru
        _
    $region6: #{model_forward.1} parent=1 // loop_footer
      %s18 = sadd.s32 1, %s14
    $region7: #{model_forward.1} parent=1 // loop_footer_branch
      %13 = sbr.rel target = $region3
    $region8: #{model_forward.1} parent=1 // loop_exit
      _
    %641 = vsyncpa [#allocation3], 1
    %s642 = scalar_lea.sflag [#allocation3], 1
    %643 = vsyncpa %s642, 1

</llo_original>
